<compile_context>
chip_gen: v6e
topology: v6e:2x2x1
jax: 0.10.0
libtpu: 0.0.40
codegen_flags: <defaults>
</compile_context>

<pallas_src>
import jax
import jax.numpy as jnp
from jax import lax
from jax.experimental import pallas as pl
from jax.experimental.pallas import tpu as pltpu


def _round_up(n, m):
    return ((n + m - 1) // m) * m


# ---------------------------------------------------------------------------
# Kernels
# ---------------------------------------------------------------------------
def _fwd_math(emb_ref, w1t_ref, b1_ref, w2_ref, b2_ref):
    """Shared fc1 -> ReLU -> fc2 -> sigmoid; returns (1, TB) probabilities (f32)."""
    x = emb_ref[...]                                     # (TB, D), stream dtype
    # fc1: MXU-natural (TB,D)@(D,H) — no relayout of the streamed emb tile.
    h = jnp.dot(x, w1t_ref[...], preferred_element_type=jnp.float32)   # (TB, H) f32
    h = jnp.maximum(h + b1_ref[...], 0.0)                # b1 is (1, H), broadcasts

    # fc2 (out_features = 1) in transposed orientation so the result is a
    # lane-dense (1, TB) slab; only the (TB, H) activation (half the emb tile)
    # ever needs relayout to feed the MXU RHS.
    zt = lax.dot_general(w2_ref[...], h,
                         dimension_numbers=(((1,), (1,)), ((), ())),
                         preferred_element_type=jnp.float32)            # (1, TB)
    return jax.nn.sigmoid(zt + b2_ref[0])                # b2 is an SMEM scalar


def _infer_kernel(emb_ref, w1t_ref, b1_ref, w2_ref, b2_ref, out_ref):
    """Inference-only tile: sigmoid probabilities, no BCE work / writes."""
    p = _fwd_math(emb_ref, w1t_ref, b1_ref, w2_ref, b2_ref)
    out_ref[...] = p.astype(out_ref.dtype)               # (1, TB) lane-dense


def _loss_kernel(emb_ref, w1t_ref, b1_ref, w2_ref, b2_ref, lab_ref, out_ref):
    """Training tile: row 0 = probabilities, row 1 = per-sample BCE."""
    p = _fwd_math(emb_ref, w1t_ref, b1_ref, w2_ref, b2_ref)
    y = lab_ref[...]                                     # (1, TB)
    # torch.nn.functional.binary_cross_entropy clamps the log terms at -100.
    log_p = jnp.maximum(jnp.log(p), -100.0)
    log_1mp = jnp.maximum(jnp.log(1.0 - p), -100.0)
    bce = -(y * log_p + (1.0 - y) * log_1mp)
    out_ref[...] = jnp.concatenate([p, bce], axis=0).astype(out_ref.dtype)


# ---------------------------------------------------------------------------
# Wrapper
# ---------------------------------------------------------------------------
def _choose_batch_tile(B, D, itemsize, *, target_bytes, min_tiles, vmem_budget):
    """Pick a lane-aligned batch tile ~target_bytes per emb buffer."""
    b_ceil = _round_up(B, 128)
    tb = (target_bytes // max(D * itemsize, 1)) // 128 * 128
    tb = int(max(tb, 128))
    # Keep >= min_tiles grid steps when the batch allows it (megacore on v7x).
    if b_ceil >= min_tiles * 128:
        tb = min(tb, _round_up((b_ceil + min_tiles - 1) // min_tiles, 128))
    tb = min(tb, b_ceil)
    # Cap so the double-buffered emb stream stays inside the VMEM budget.
    max_tb = (vmem_budget // (2 * D * itemsize)) // 128 * 128
    tb = min(tb, max(int(max_tb), 128))
    return tb


def ensemble_forward(emb, w1, b1, w2, b2, labels=None, *,
                     stream_dtype=None,
                     target_tile_bytes=2 << 20,
                     min_tiles=2,
                     vmem_budget_bytes=40 << 20):
    """Forward pass of `Ensemble`.

    emb:    (B, D)             embeddings
    w1:     (H, D), b1: (H,)   fc1 weights in PyTorch (out, in) layout, H = D//2
    w2:     (1, H), b2: (1,)   fc2 weights in PyTorch layout
    labels: optional (B,) or (B, 1)
    stream_dtype: e.g. jnp.bfloat16 to halve HBM traffic of emb / w1
                  (elementwise / BCE math stays f32 inside the kernel).

    Returns (probs of shape (B, 1), loss scalar or None).
    """
    B, D = emb.shape
    H = w1.shape[0]

    # MXU-natural weight layouts.  w1ᵀ is VMEM-resident; b1/w2/b2 stay f32.
    w1t = jnp.asarray(w1).T                              # (D, H)
    b1r = jnp.asarray(b1, jnp.float32).reshape(1, H)
    w2r = jnp.asarray(w2, jnp.float32).reshape(1, H)
    b2r = jnp.asarray(b2, jnp.float32).reshape(1)

    if stream_dtype is not None:
        emb = emb.astype(stream_dtype)
        w1t = w1t.astype(stream_dtype)

    itemsize = jnp.dtype(emb.dtype).itemsize
    tb = _choose_batch_tile(B, D, itemsize,
                            target_bytes=target_tile_bytes,
                            min_tiles=min_tiles,
                            vmem_budget=vmem_budget_bytes)
    b_pad = _round_up(B, tb)
    if b_pad != B:
        emb = jnp.pad(emb, ((0, b_pad - B), (0, 0)))

    with_loss = labels is not None
    n_rows = 2 if with_loss else 1

    # Explicit VMEM budget: double-buffered emb stream dominates; weights are
    # counted twice (worst case even with a constant index_map).
    vmem_bytes = (2 * tb * D * itemsize                     # emb (2 buffers)
                  + 2 * D * H * w1t.dtype.itemsize          # w1ᵀ
                  + 4 * 2 * H * 4                           # b1 / w2
                  + 2 * n_rows * tb * 4                     # fused output slab
                  + (2 * tb * 4 if with_loss else 0)        # labels
                  + (4 << 20))                              # headroom / scratch
    vmem_limit = int(min(max(vmem_bytes, 32 << 20), 128 << 20))

    grid = (b_pad // tb,)
    emb_spec = pl.BlockSpec((tb, D), lambda i: (i, 0))       # streamed
    weight_specs = [
        pl.BlockSpec((D, H), lambda i: (0, 0)),              # w1ᵀ: VMEM resident
        pl.BlockSpec((1, H), lambda i: (0, 0)),               # b1
        pl.BlockSpec((1, H), lambda i: (0, 0)),               # w2
        pl.BlockSpec(memory_space=pltpu.MemorySpace.SMEM),    # b2 scalar
    ]
    out_spec = pl.BlockSpec((n_rows, tb), lambda i: (0, i))   # lane-dense slab
    compiler_params = pltpu.CompilerParams(
        dimension_semantics=("parallel",),
        vmem_limit_bytes=vmem_limit)
    # TODO(synk): for very large D on v7x (64 MiB VMEM), additionally mark the
    # weight specs pipeline_mode=pl.Buffered(1) and/or pass bf16 weights.

    if with_loss:
        lab = jnp.asarray(labels, jnp.float32).reshape(1, B)
        if b_pad != B:
            lab = jnp.pad(lab, ((0, 0), (0, b_pad - B)))
        out = pl.pallas_call(
            _loss_kernel,
            out_shape=jax.ShapeDtypeStruct((2, b_pad), jnp.float32),
            grid_spec=pltpu.PrefetchScalarGridSpec(
                num_scalar_prefetch=0,
                grid=grid,
                in_specs=[emb_spec] + weight_specs
                         + [pl.BlockSpec((1, tb), lambda i: (0, i))],
                out_specs=out_spec),
            compiler_params=compiler_params,
        )(emb, w1t, b1r, w2r, b2r, lab)
        probs = out[0, :B].reshape(B, 1)
        loss = jnp.mean(out[1, :B])                  # mean over valid batch only
        return probs, loss

    out = pl.pallas_call(
        _infer_kernel,
        out_shape=jax.ShapeDtypeStruct((1, b_pad), jnp.float32),
        grid_spec=pltpu.PrefetchScalarGridSpec(
            num_scalar_prefetch=0,
            grid=grid,
            in_specs=[emb_spec] + weight_specs,
            out_specs=out_spec),
        compiler_params=compiler_params,
    )(emb, w1t, b1r, w2r, b2r)
    return out[0, :B].reshape(B, 1), None


# ---------------------------------------------------------------------------
# Demo / self-test
# ---------------------------------------------------------------------------
if __name__ == "__main__":
    # Small shapes; B=200 exercises a 2-tile grid (tb=128) plus tail padding.
    B, D = 200, 32
    H = D // 2

    key = jax.random.PRNGKey(0)
    ks = jax.random.split(key, 6)

    # Deterministic nn.Linear-style init: U(-1/sqrt(fan_in), 1/sqrt(fan_in)),
    # weights kept in PyTorch (out_features, in_features) layout.
    bound1 = 1.0 / float(D) ** 0.5
    w1 = jax.random.uniform(ks[0], (H, D), jnp.float32, -bound1, bound1)
    b1 = jax.random.uniform(ks[1], (H,), jnp.float32, -bound1, bound1)
    bound2 = 1.0 / float(H) ** 0.5
    w2 = jax.random.uniform(ks[2], (1, H), jnp.float32, -bound2, bound2)
    b2 = jax.random.uniform(ks[3], (1,), jnp.float32, -bound2, bound2)

    emb = jax.random.normal(ks[4], (B, D), jnp.float32)
    labels = (jax.random.uniform(ks[5], (B,)) > 0.5).astype(jnp.float32)

    probs, loss = ensemble_forward(emb, w1, b1, w2, b2, labels)
    jax.block_until_ready((probs, loss))

    # Pure-JAX reference (matches torch forward; "logits" are post-sigmoid).
    h_ref = jnp.maximum(emb @ w1.T + b1, 0.0)
    p_ref = jax.nn.sigmoid(h_ref @ w2.T + b2)                 # (B, 1)
    pr = p_ref[:, 0]
    loss_ref = jnp.mean(-(labels * jnp.log(pr) +
                          (1.0 - labels) * jnp.log(1.0 - pr)))

    assert probs.shape == (B, 1)
    assert jnp.allclose(probs, p_ref, atol=1e-4, rtol=1e-4)
    assert jnp.allclose(loss, loss_ref, atol=1e-4, rtol=1e-4)

    # labels=None path: loss-free kernel variant (no BCE output / labels DMA).
    probs2, loss2 = ensemble_forward(emb, w1, b1, w2, b2, None)
    jax.block_until_ready(probs2)
    assert loss2 is None
    assert jnp.allclose(probs2, probs, atol=1e-6)

    # bf16 streaming of emb / w1 (halves HBM bytes); elementwise stays f32.
    probs_b, loss_b = ensemble_forward(emb, w1, b1, w2, b2, labels,
                                       stream_dtype=jnp.bfloat16)
    jax.block_until_ready((probs_b, loss_b))
    assert jnp.allclose(probs_b, p_ref, atol=3e-2)
    assert jnp.allclose(loss_b, loss_ref, atol=3e-2)

    print("KERNEL_OK")
</pallas_src>

<mosaic_0001>
module attributes {stable_mosaic.version = 11 : i64} {
  func.func @_loss_kernel(%arg0: i32, %arg1: memref<128x32xf32, #tpu.memory_space<vmem>>, %arg2: memref<32x16xf32, #tpu.memory_space<vmem>>, %arg3: memref<1x16xf32, #tpu.memory_space<vmem>>, %arg4: memref<1x16xf32, #tpu.memory_space<vmem>>, %arg5: memref<1xf32, #tpu.memory_space<smem>>, %arg6: memref<1x128xf32, #tpu.memory_space<vmem>>, %arg7: memref<2x128xf32, #tpu.memory_space<vmem>>) attributes {dimension_semantics = [#tpu.dimension_semantics<parallel>], iteration_bounds = array<i64: 2>, scalar_prefetch = 0 : i64, scratch_operands = 0 : i64, tpu.core_type = #tpu.core_type<tc>, window_params = [{transform_indices = @transform_0, window_bounds = array<i64: 128, 32>}, {pipeline_mode = #tpu.pipeline_mode<synchronous>, transform_indices = @transform_1, window_bounds = array<i64: 32, 16>}, {pipeline_mode = #tpu.pipeline_mode<synchronous>, transform_indices = @transform_2, window_bounds = array<i64: 1, 16>}, {pipeline_mode = #tpu.pipeline_mode<synchronous>, transform_indices = @transform_3, window_bounds = array<i64: 1, 16>}, {transform_indices = @transform_4, window_bounds = array<i64: 1>}, {transform_indices = @transform_5, window_bounds = array<i64: 1, 128>}, {transform_indices = @transform_6, window_bounds = array<i64: 2, 128>}]} {
    %c0 = arith.constant 0 : index
    %c0_0 = arith.constant 0 : index
    %0 = vector.load %arg1[%c0, %c0_0] : memref<128x32xf32, #tpu.memory_space<vmem>>, vector<128x32xf32>
    %c0_1 = arith.constant 0 : index
    %c0_2 = arith.constant 0 : index
    %1 = vector.load %arg2[%c0_1, %c0_2] : memref<32x16xf32, #tpu.memory_space<vmem>>, vector<32x16xf32>
    %cst = arith.constant dense<0.000000e+00> : vector<128x16xf32>
    %2 = tpu.matmul %0, %1, %cst {dimension_numbers = #tpu.dot_dimension_numbers<[1], [0], [0], [1], [0, 0, 1, 1], [], []>} : vector<128x32xf32>, vector<32x16xf32>, vector<128x16xf32> -> vector<128x16xf32>
    %c0_3 = arith.constant 0 : index
    %c0_4 = arith.constant 0 : index
    %3 = vector.load %arg3[%c0_3, %c0_4] : memref<1x16xf32, #tpu.memory_space<vmem>>, vector<1x16xf32>
    %4 = vector.broadcast %3 : vector<1x16xf32> to vector<128x16xf32>
    %5 = arith.addf %2, %4 : vector<128x16xf32>
    %cst_5 = arith.constant 0.000000e+00 : f32
    %6 = vector.broadcast %cst_5 : f32 to vector<128x16xf32>
    %7 = arith.maximumf %5, %6 : vector<128x16xf32>
    %c0_6 = arith.constant 0 : index
    %c0_7 = arith.constant 0 : index
    %8 = vector.load %arg4[%c0_6, %c0_7] : memref<1x16xf32, #tpu.memory_space<vmem>>, vector<1x16xf32>
    %cst_8 = arith.constant dense<0.000000e+00> : vector<1x128xf32>
    %9 = tpu.matmul %8, %7, %cst_8 {dimension_numbers = #tpu.dot_dimension_numbers<[1], [1], [0], [0], [0, 0, 1, 0], [], []>} : vector<1x16xf32>, vector<128x16xf32>, vector<1x128xf32> -> vector<1x128xf32>
    %c0_9 = arith.constant 0 : index
    %10 = memref.load %arg5[%c0_9] : memref<1xf32, #tpu.memory_space<smem>>
    %11 = vector.broadcast %10 : f32 to vector<1x128xf32>
    %12 = arith.addf %9, %11 : vector<1x128xf32>
    %13 = arith.negf %12 : vector<1x128xf32>
    %14 = math.exp %13 : vector<1x128xf32>
    %cst_10 = arith.constant 1.000000e+00 : f32
    %15 = vector.broadcast %cst_10 : f32 to vector<1x128xf32>
    %16 = arith.addf %15, %14 : vector<1x128xf32>
    %17 = arith.divf %15, %16 : vector<1x128xf32>
    %c0_11 = arith.constant 0 : index
    %c0_12 = arith.constant 0 : index
    %18 = vector.load %arg6[%c0_11, %c0_12] : memref<1x128xf32, #tpu.memory_space<vmem>>, vector<1x128xf32>
    %19 = math.log %17 : vector<1x128xf32>
    %cst_13 = arith.constant -1.000000e+02 : f32
    %20 = vector.broadcast %cst_13 : f32 to vector<1x128xf32>
    %21 = arith.maximumf %19, %20 : vector<1x128xf32>
    %cst_14 = arith.constant 1.000000e+00 : f32
    %22 = vector.broadcast %cst_14 : f32 to vector<1x128xf32>
    %23 = arith.subf %22, %17 : vector<1x128xf32>
    %24 = math.log %23 : vector<1x128xf32>
    %cst_15 = arith.constant -1.000000e+02 : f32
    %25 = vector.broadcast %cst_15 : f32 to vector<1x128xf32>
    %26 = arith.maximumf %24, %25 : vector<1x128xf32>
    %27 = arith.mulf %18, %21 : vector<1x128xf32>
    %cst_16 = arith.constant 1.000000e+00 : f32
    %28 = vector.broadcast %cst_16 : f32 to vector<1x128xf32>
    %29 = arith.subf %28, %18 : vector<1x128xf32>
    %30 = arith.mulf %29, %26 : vector<1x128xf32>
    %31 = arith.addf %27, %30 : vector<1x128xf32>
    %cst_17 = arith.constant 0.000000e+00 : f32
    %32 = vector.broadcast %cst_17 : f32 to vector<1x128xf32>
    %33 = arith.subf %32, %31 : vector<1x128xf32>
    %34 = tpu.concatenate %17, %33 in 0 : vector<1x128xf32>, vector<1x128xf32> -> vector<2x128xf32>
    %c0_18 = arith.constant 0 : index
    %c0_19 = arith.constant 0 : index
    %35 = vector.load %arg7[%c0_18, %c0_19] : memref<2x128xf32, #tpu.memory_space<vmem>>, vector<2x128xf32>
    tpu.vector_store %arg7[%c0_18, %c0_19], %34 {strides = array<i32>} : memref<2x128xf32, #tpu.memory_space<vmem>>, vector<2x128xf32>,
    return
  }
  func.func @transform_0(%arg0: i32) -> (i32, i32) {
    %c0_i32 = arith.constant 0 : i32
    %c0_i32_0 = arith.constant 0 : i32
    return %arg0, %c0_i32 : i32, i32
  }
  func.func @transform_1(%arg0: i32) -> (i32, i32) {
    %c0_i32 = arith.constant 0 : i32
    %c0_i32_0 = arith.constant 0 : i32
    %c0_i32_1 = arith.constant 0 : i32
    return %c0_i32, %c0_i32_0 : i32, i32
  }
  func.func @transform_2(%arg0: i32) -> (i32, i32) {
    %c0_i32 = arith.constant 0 : i32
    %c0_i32_0 = arith.constant 0 : i32
    %c0_i32_1 = arith.constant 0 : i32
    return %c0_i32, %c0_i32_0 : i32, i32
  }
  func.func @transform_3(%arg0: i32) -> (i32, i32) {
    %c0_i32 = arith.constant 0 : i32
    %c0_i32_0 = arith.constant 0 : i32
    %c0_i32_1 = arith.constant 0 : i32
    return %c0_i32, %c0_i32_0 : i32, i32
  }
  func.func @transform_4(%arg0: i32) -> i32 {
    %c0_i32 = arith.constant 0 : i32
    %c0_i32_0 = arith.constant 0 : i32
    return %c0_i32 : i32
  }
  func.func @transform_5(%arg0: i32) -> (i32, i32) {
    %c0_i32 = arith.constant 0 : i32
    %c0_i32_0 = arith.constant 0 : i32
    return %c0_i32, %arg0 : i32, i32
  }
  func.func @transform_6(%arg0: i32) -> (i32, i32) {
    %c0_i32 = arith.constant 0 : i32
    %c0_i32_0 = arith.constant 0 : i32
    return %c0_i32, %arg0 : i32, i32
  }
}

</mosaic_0001>

<llo_original>
// kernel: tpu_custom_call.1
$region0: #{tpu_custom_call.1}
  #allocation0 [shape = 'u32[]', space=smem, size = 0x4, offset = 0x4, fixed_abs, tag = 'smem constant byte address 0x4 - core index']
  #allocation1 [shape = 'u32[144,128]{1,0:T(1,128)}', space=vmem, size = 0x12000, scoped, tag = 'internal scratch']
  #allocation2 [shape = 'f32[1]{0:T(128)S(6)}', space=smem, size = 0x200, scoped, tag = 'scoped memory for tpu_custom_call.1']
  %s0 = inlined_call_operand.vmem [shape: f32[256,32], index: 0, kind: input, shape index: {}]
  %s1 = inlined_call_operand.vmem [shape: f32[32,16], index: 1, kind: input, shape index: {}]
  %s2 = inlined_call_operand.vmem [shape: f32[1,16], index: 2, kind: input, shape index: {}]
  %s3 = inlined_call_operand.vmem [shape: f32[1,16], index: 3, kind: input, shape index: {}]
  %s4 = inlined_call_operand.<no memory space> [shape: f32[1], index: 4, kind: input, shape index: {}]
  %s5 = inlined_call_operand.vmem [shape: f32[1,256], index: 5, kind: input, shape index: {}]
  %s6 = inlined_call_operand.hbm [shape: f32[2,256], index: 6, kind: output, shape index: {}]
  %s7 = sld [smem:[#allocation0]]
  $region57: #{tpu_custom_call.1} parent=0
    _
  %s9 = ssub.s32 1, %s7
  %s10 = scalar_select 0, %s9, %s7
  %11 = sst [smem:[#allocation2]] %s4
  $region1: #{tpu_custom_call.1} parent=0
    #allocation3 [shape = 'u8[2048]{0}', space=vmem, size = 0x800, scoped, tag = 'output window, operand 0']
    #allocation4 [shape = 's32[2]{0}', space=sflag, size = 0x8, scoped, tag = 'scoped memory for tpu_custom_call.1']
    %12 = vsyncpa [#allocation4], 0
    %s13 = scalar_lea.sflag [#allocation4], 1
    %14 = vsyncpa %s13, 0
    loop: start=0, step=1, limit=4
    $region2: #{tpu_custom_call.1} parent=1 // loop_pre_header
      _
    $region3: #{tpu_custom_call.1} parent=1 // loop_header
      %s16 = sphi 0, %s20
      %p17 = scmp.ge.s32.totalorder %s16, 4
      %s26 = sphi 0, %s28
      %s29 = sphi 0, %s26
      %s30 = sphi 0, %s29
      %s46 = sphi 0, %s30
      %s50 = sphi 0, %s50
      %s52 = sphi 0, %s50
      %s53 = sphi 0, %s52
      %s67 = sphi 0, %s53
      %s71 = sphi 0, %s71
      %s73 = sphi 0, %s71
      %s74 = sphi 0, %s73
      %s88 = sphi 0, %s74
      %s92 = sphi 0, %s92
      %s94 = sphi 0, %s92
      %s95 = sphi 0, %s94
      %s109 = sphi 0, %s95
      %s113 = sphi 0, %s113
      %s115 = sphi 0, %s113
      %s116 = sphi 0, %s115
      %s130 = sphi 0, %s116
      %s136 = sphi 0, %s138
      %s139 = sphi 0, %s136
      %s140 = sphi 0, %s139
      %s156 = sphi 0, %s140
      %s162 = sphi 0, %s164
      %s165 = sphi 0, %s162
      %s166 = sphi 0, %s165
      %s182 = sphi 0, %s166
    $region4: #{tpu_custom_call.1} parent=1 // loop_header_branch
      %19 = sbr.rel (%p17) target = $region8
    $region5: #{tpu_custom_call.1} parent=1 // loop_body
      %s21 = ssub.s32 %s16, 1
      %s22 = ssub.s32 %s16, 2
      %s23 = sadd.s32 %s16, 1
      %s24 = ssub.s32 %s16, %s23
      %p25 = scmp.eq.s32.totalorder %s24, 0
      %s27 = sadd.s32 %s26, 1
      %s28 = scalar_select %p25, %s26, %s27
      %p31 = pneg %p25
      %p32 = scmp.eq.s32.totalorder %s16, 1
      %p33 = por %p31, %p32
      %p34 = scmp.ne.s32.totalorder %s26, %s29
      %p35 = scmp.eq.s32.totalorder %s16, 0
      %p36 = por %p34, %p35
      %p37 = scmp.ne.s32.totalorder %s26, %s29
      %p38 = scmp.eq.s32.totalorder %s21, 1
      %p39 = por %p37, %p38
      %p40 = scmp.ne.s32.totalorder %s29, %s30
      %p41 = scmp.eq.s32.totalorder %s21, 0
      %p42 = por %p40, %p41
      %p43 = scmp.ne.s32.totalorder %s29, %s30
      %p44 = scmp.eq.s32.totalorder %s22, 1
      %p45 = por %p43, %p44
      %p47 = scmp.ne.s32.totalorder %s30, %s46
      %p48 = scmp.eq.s32.totalorder %s22, 0
      %p49 = por %p47, %p48
      %s51 = sadd.s32 %s50, 1
      %p54 = scmp.eq.s32.totalorder %s16, 1
      %p55 = scmp.ne.s32.totalorder %s50, %s52
      %p56 = scmp.eq.s32.totalorder %s16, 0
      %p57 = por %p55, %p56
      %p58 = scmp.ne.s32.totalorder %s50, %s52
      %p59 = scmp.eq.s32.totalorder %s21, 1
      %p60 = por %p58, %p59
      %p61 = scmp.ne.s32.totalorder %s52, %s53
      %p62 = scmp.eq.s32.totalorder %s21, 0
      %p63 = por %p61, %p62
      %p64 = scmp.ne.s32.totalorder %s52, %s53
      %p65 = scmp.eq.s32.totalorder %s22, 1
      %p66 = por %p64, %p65
      %p68 = scmp.ne.s32.totalorder %s53, %s67
      %p69 = scmp.eq.s32.totalorder %s22, 0
      %p70 = por %p68, %p69
      %s72 = sadd.s32 %s71, 1
      %p75 = scmp.eq.s32.totalorder %s16, 1
      %p76 = scmp.ne.s32.totalorder %s71, %s73
      %p77 = scmp.eq.s32.totalorder %s16, 0
      %p78 = por %p76, %p77
      %p79 = scmp.ne.s32.totalorder %s71, %s73
      %p80 = scmp.eq.s32.totalorder %s21, 1
      %p81 = por %p79, %p80
      %p82 = scmp.ne.s32.totalorder %s73, %s74
      %p83 = scmp.eq.s32.totalorder %s21, 0
      %p84 = por %p82, %p83
      %p85 = scmp.ne.s32.totalorder %s73, %s74
      %p86 = scmp.eq.s32.totalorder %s22, 1
      %p87 = por %p85, %p86
      %p89 = scmp.ne.s32.totalorder %s74, %s88
      %p90 = scmp.eq.s32.totalorder %s22, 0
      %p91 = por %p89, %p90
      %s93 = sadd.s32 %s92, 1
      %p96 = scmp.eq.s32.totalorder %s16, 1
      %p97 = scmp.ne.s32.totalorder %s92, %s94
      %p98 = scmp.eq.s32.totalorder %s16, 0
      %p99 = por %p97, %p98
      %p100 = scmp.ne.s32.totalorder %s92, %s94
      %p101 = scmp.eq.s32.totalorder %s21, 1
      %p102 = por %p100, %p101
      %p103 = scmp.ne.s32.totalorder %s94, %s95
      %p104 = scmp.eq.s32.totalorder %s21, 0
      %p105 = por %p103, %p104
      %p106 = scmp.ne.s32.totalorder %s94, %s95
      %p107 = scmp.eq.s32.totalorder %s22, 1
      %p108 = por %p106, %p107
      %p110 = scmp.ne.s32.totalorder %s95, %s109
      %p111 = scmp.eq.s32.totalorder %s22, 0
      %p112 = por %p110, %p111
      %s114 = sadd.s32 %s113, 1
      %p117 = scmp.eq.s32.totalorder %s16, 1
      %p118 = scmp.ne.s32.totalorder %s113, %s115
      %p119 = scmp.eq.s32.totalorder %s16, 0
      %p120 = por %p118, %p119
      %p121 = scmp.ne.s32.totalorder %s113, %s115
      %p122 = scmp.eq.s32.totalorder %s21, 1
      %p123 = por %p121, %p122
      %p124 = scmp.ne.s32.totalorder %s115, %s116
      %p125 = scmp.eq.s32.totalorder %s21, 0
      %p126 = por %p124, %p125
      %p127 = scmp.ne.s32.totalorder %s115, %s116
      %p128 = scmp.eq.s32.totalorder %s22, 1
      %p129 = por %p127, %p128
      %p131 = scmp.ne.s32.totalorder %s116, %s130
      %p132 = scmp.eq.s32.totalorder %s22, 0
      %p133 = por %p131, %p132
      %s134 = ssub.s32 %s16, %s23
      %p135 = scmp.eq.s32.totalorder %s134, 0
      %s137 = sadd.s32 %s136, 1
      %s138 = scalar_select %p135, %s136, %s137
      %p141 = pneg %p135
      %p142 = scmp.eq.s32.totalorder %s16, 1
      %p143 = por %p141, %p142
      %p144 = scmp.ne.s32.totalorder %s136, %s139
      %p145 = scmp.eq.s32.totalorder %s16, 0
      %p146 = por %p144, %p145
      %p147 = scmp.ne.s32.totalorder %s136, %s139
      %p148 = scmp.eq.s32.totalorder %s21, 1
      %p149 = por %p147, %p148
      %p150 = scmp.ne.s32.totalorder %s139, %s140
      %p151 = scmp.eq.s32.totalorder %s21, 0
      %p152 = por %p150, %p151
      %p153 = scmp.ne.s32.totalorder %s139, %s140
      %p154 = scmp.eq.s32.totalorder %s22, 1
      %p155 = por %p153, %p154
      %p157 = scmp.ne.s32.totalorder %s140, %s156
      %p158 = scmp.eq.s32.totalorder %s22, 0
      %p159 = por %p157, %p158
      %s160 = ssub.s32 %s16, %s23
      %p161 = scmp.eq.s32.totalorder %s160, 0
      %s163 = sadd.s32 %s162, 1
      %s164 = scalar_select %p161, %s162, %s163
      %p167 = pneg %p161
      %p168 = scmp.eq.s32.totalorder %s16, 1
      %p169 = por %p167, %p168
      %p170 = scmp.ne.s32.totalorder %s162, %s165
      %p171 = scmp.eq.s32.totalorder %s16, 0
      %p172 = por %p170, %p171
      %p173 = scmp.ne.s32.totalorder %s162, %s165
      %p174 = scmp.eq.s32.totalorder %s21, 1
      %p175 = por %p173, %p174
      %p176 = scmp.ne.s32.totalorder %s165, %s166
      %p177 = scmp.eq.s32.totalorder %s21, 0
      %p178 = por %p176, %p177
      %p179 = scmp.ne.s32.totalorder %s165, %s166
      %p180 = scmp.eq.s32.totalorder %s22, 1
      %p181 = por %p179, %p180
      %p183 = scmp.ne.s32.totalorder %s166, %s182
      %p184 = scmp.eq.s32.totalorder %s22, 0
      %p185 = por %p183, %p184
      %p186 = scmp.le.s32.totalorder 1, %s16
      %p187 = scmp.lt.s32.totalorder %s16, 3
      %p188 = pnand %p186, %p187
      %p189 = pneg %p188
      // Predicated region
      $region9: #{tpu_custom_call.1} parent=5 // pred_check
        _
      $region10: #{tpu_custom_call.1} parent=5 // pred_check_branch
        %191 = sbr.rel (%p188) target = $region12
      $region11: #{tpu_custom_call.1} parent=5 // pred_region
        %s192 = ssub.s32 %s16, 1
        // Predicated region
        $region13: #{tpu_custom_call.1} parent=11 // pred_check
          %p193 = pneg %p63
        $region14: #{tpu_custom_call.1} parent=11 // pred_check_branch
          %195 = sbr.rel (%p193) target = $region16
        $region15: #{tpu_custom_call.1} parent=11 // pred_region
          _
        $region16: #{tpu_custom_call.1} parent=11 // pred_fallthru
          _
        // Predicated region
        $region17: #{tpu_custom_call.1} parent=11 // pred_check
          %p196 = pneg %p84
        $region18: #{tpu_custom_call.1} parent=11 // pred_check_branch
          %198 = sbr.rel (%p196) target = $region20
        $region19: #{tpu_custom_call.1} parent=11 // pred_region
          _
        $region20: #{tpu_custom_call.1} parent=11 // pred_fallthru
          _
        // Predicated region
        $region21: #{tpu_custom_call.1} parent=11 // pred_check
          %p199 = pneg %p105
        $region22: #{tpu_custom_call.1} parent=11 // pred_check_branch
          %201 = sbr.rel (%p199) target = $region24
        $region23: #{tpu_custom_call.1} parent=11 // pred_region
          _
        $region24: #{tpu_custom_call.1} parent=11 // pred_fallthru
          _
        // Predicated region
        $region25: #{tpu_custom_call.1} parent=11 // pred_check
          %p202 = pneg %p126
        $region26: #{tpu_custom_call.1} parent=11 // pred_check_branch
          %204 = sbr.rel (%p202) target = $region28
        $region27: #{tpu_custom_call.1} parent=11 // pred_region
          _
        $region28: #{tpu_custom_call.1} parent=11 // pred_fallthru
          _
      $region12: #{tpu_custom_call.1} parent=5 // pred_fallthru
        _
      %p205 = scmp.lt.s32.totalorder %s16, 2
      // Predicated region
      $region29: #{tpu_custom_call.1} parent=5 // pred_check
        %p206 = pneg %p205
      $region30: #{tpu_custom_call.1} parent=5 // pred_check_branch
        %208 = sbr.rel (%p206) target = $region32
      $region31: #{tpu_custom_call.1} parent=5 // pred_region
        // Predicated region
        $region33: #{tpu_custom_call.1} parent=31 // pred_check
          %p209 = pneg %p36
        $region34: #{tpu_custom_call.1} parent=31 // pred_check_branch
          %211 = sbr.rel (%p209) target = $region36
        $region35: #{tpu_custom_call.1} parent=31 // pred_region
          %s212 = smul.u32 16, %s16
          %p213 = scmp.lt.s32.totalorder %s212, 31
          %s214 = scalar_select %p213, %s212, 31
          %s215 = smul.addr %s214, 8
          %s216 = scalar_lea.vmem %s0, %s215
          %s217 = smul.u32 16, %s16
        $region36: #{tpu_custom_call.1} parent=31 // pred_fallthru
          _
        // Predicated region
        $region37: #{tpu_custom_call.1} parent=31 // pred_check
          %p218 = pneg %p146
        $region38: #{tpu_custom_call.1} parent=31 // pred_check_branch
          %220 = sbr.rel (%p218) target = $region40
        $region39: #{tpu_custom_call.1} parent=31 // pred_region
          %p221 = scmp.lt.s32.totalorder %s16, 1
          %s222 = scalar_select %p221, %s16, 1
          %s223 = scalar_lea.vmem %s5, %s222
        $region40: #{tpu_custom_call.1} parent=31 // pred_fallthru
          _
      $region32: #{tpu_custom_call.1} parent=5 // pred_fallthru
        _
      %p224 = scmp.le.s32.totalorder 1, %s16
      %p225 = scmp.lt.s32.totalorder %s16, 3
      %p226 = pnand %p224, %p225
      %p227 = pneg %p226
      // Predicated region
      $region41: #{tpu_custom_call.1} parent=5 // pred_check
        _
      $region42: #{tpu_custom_call.1} parent=5 // pred_check_branch
        %229 = sbr.rel (%p226) target = $region44
      $region43: #{tpu_custom_call.1} parent=5 // pred_region
        %s230 = ssub.s32 %s16, 1
        %s231 = smul.u32 16, %s21
        %p232 = scmp.lt.s32.totalorder %s231, 31
        %s233 = scalar_select %p232, %s231, 31
        %s234 = smul.addr %s233, 8
        %s235 = scalar_lea.vmem %s0, %s234
        %p236 = pneg %p42
        %p237 = pneg %p39
        %p238 = pneg %p63
        %p239 = pneg %p60
        %p240 = pneg %p84
        %p241 = pneg %p81
        %p242 = pneg %p105
        %p243 = pneg %p102
        %p244 = pneg %p126
        %p245 = pneg %p123
        %p246 = scmp.lt.s32.totalorder %s21, 1
        %s247 = scalar_select %p246, %s21, 1
        %s248 = scalar_lea.vmem %s5, %s247
        %p249 = pneg %p152
        %p250 = pneg %p149
        %p251 = pneg %p178
        %p252 = pneg %p175
        %s253 = sand.u32 %s165, 1
        %s254 = scalar_lea.sflag [#allocation4], %s253
        %s255 = sand.u32 %s165, 1
        %s256 = smul.addr %s255, 2
        %s257 = scalar_lea.vmem [#allocation3], %s256
        %s258 = smul.u32 16, %s21
        %p259 = scmp.lt.s32.totalorder %s258, 31
        %s260 = scalar_select %p259, %s258, 31
        %s261 = smul.addr %s260, 8
        %s262 = scalar_lea.vmem %s0, %s261
        %s263 = smul.u32 16, %s21
        %p264 = scmp.lt.s32.totalorder %s21, 1
        %s265 = scalar_select %p264, %s21, 1
        %s266 = scalar_lea.vmem %s5, %s265
        %v267 = vld [vmem:[%s262] sm:$0xff]
        %v268 = vld [vmem:[%s262 + $0x8] sm:$0xff]
        %v269 = vld [vmem:[%s262 + $0x10] sm:$0xff]
        %v270 = vld [vmem:[%s262 + $0x18] sm:$0xff]
        %v271 = vld [vmem:[%s262 + $0x20] sm:$0xff]
        %v272 = vld [vmem:[%s262 + $0x28] sm:$0xff]
        %v273 = vld [vmem:[%s262 + $0x30] sm:$0xff]
        %v274 = vld [vmem:[%s262 + $0x38] sm:$0xff]
        %v275 = vld [vmem:[%s262 + $0x40] sm:$0xff]
        %v276 = vld [vmem:[%s262 + $0x48] sm:$0xff]
        %v277 = vld [vmem:[%s262 + $0x50] sm:$0xff]
        %v278 = vld [vmem:[%s262 + $0x58] sm:$0xff]
        %v279 = vld [vmem:[%s262 + $0x60] sm:$0xff]
        %v280 = vld [vmem:[%s262 + $0x68] sm:$0xff]
        %v281 = vld [vmem:[%s262 + $0x70] sm:$0xff]
        %v282 = vld [vmem:[%s262 + $0x78] sm:$0xff]
        %v283 = vld [vmem:[%s1] sm:$0xff]
        %v284 = vld [vmem:[%s1 + $0x8] sm:$0xff]
        %v285 = vld [vmem:[%s1 + $0x10] sm:$0xff]
        %v286 = vld [vmem:[%s1 + $0x18] sm:$0xff]
        %v287 = vld [vmem:[%s2] sm:$0x1]
        %v289 = vlaneseq
        %v290 = vshrl.u32 %v289, 7
        %v291 = vsub.s32 0, %v290
        %v292 = vrot.slane %v287, %v291
        %vm294 = vcmask 261120
        %v296 = vsel %vm294, %v267, 0
        %v299 = vsel %vm294, %v268, 0
        %v302 = vsel %vm294, %v269, 0
        %v305 = vsel %vm294, %v270, 0
        %v308 = vsel %vm294, %v271, 0
        %v311 = vsel %vm294, %v272, 0
        %v314 = vsel %vm294, %v273, 0
        %v317 = vsel %vm294, %v274, 0
        %v320 = vsel %vm294, %v275, 0
        %v323 = vsel %vm294, %v276, 0
        %v326 = vsel %vm294, %v277, 0
        %v329 = vsel %vm294, %v278, 0
        %v332 = vsel %vm294, %v279, 0
        %v335 = vsel %vm294, %v280, 0
        %v338 = vsel %vm294, %v281, 0
        %v341 = vsel %vm294, %v282, 0
        %343 = vmatprep.subr.mxu0 0.0
        %344 = vmatpush1.msra.mxu0 0.0
        %345 = vmatprep.subr.mxu0 0.0
        %346 = vmatpush1.msra.mxu0 0.0
        %347 = vmatprep.subr.mxu0 0.0
        %348 = vmatpush1.msra.mxu0 0.0
        %349 = vmatprep.subr.mxu0 0.0
        %350 = vmatpush1.msra.mxu0 0.0
        %351 = vmatprep.subr.mxu0 0.0
        %352 = vmatpush1.msra.mxu0 0.0
        %353 = vmatprep.subr.mxu0 0.0
        %354 = vmatpush1.msra.mxu0 0.0
        %355 = vmatprep.subr.mxu0 0.0
        %356 = vmatpush1.msra.mxu0 0.0
        %357 = vmatprep.subr.mxu0 0.0
        %358 = vmatpush1.msra.mxu0 0.0
        %359 = vmatprep.subr.mxu0 0.0
        %360 = vmatpush1.msra.mxu0 0.0
        %361 = vmatprep.subr.mxu0 0.0
        %362 = vmatpush1.msra.mxu0 0.0
        %363 = vmatprep.subr.mxu0 0.0
        %364 = vmatpush1.msra.mxu0 0.0
        %365 = vmatprep.subr.mxu0 0.0
        %366 = vmatpush1.msra.mxu0 0.0
        %367 = vmatprep.subr.mxu0 0.0
        %368 = vmatpush1.msra.mxu0 %v286
        %369 = vmatprep.subr.mxu0 0.0
        %370 = vmatpush1.msra.mxu0 %v285
        %371 = vmatprep.subr.mxu0 0.0
        %372 = vmatpush1.msra.mxu0 %v284
        %373 = vmatprep.subr.mxu0 0.0
        %374 = vmatpush1.msra.mxu0 %v283
        %375 = vmatprep.subr.mxu0 0.0
        %376 = vmatpush2.msra.mxu0 0.0
        %377 = vmatprep.subr.mxu0 0.0
        %378 = vmatpush2.msra.mxu0 0.0
        %379 = vmatprep.subr.mxu0 0.0
        %380 = vmatpush2.msra.mxu0 0.0
        %381 = vmatprep.subr.mxu0 0.0
        %382 = vmatpush2.msra.mxu0 0.0
        %383 = vmatprep.subr.mxu0 0.0
        %384 = vmatpush2.msra.mxu0 0.0
        %385 = vmatprep.subr.mxu0 0.0
        %386 = vmatpush2.msra.mxu0 0.0
        %387 = vmatprep.subr.mxu0 0.0
        %388 = vmatpush2.msra.mxu0 0.0
        %389 = vmatprep.subr.mxu0 0.0
        %390 = vmatpush2.msra.mxu0 0.0
        %391 = vmatprep.subr.mxu0 0.0
        %392 = vmatpush2.msra.mxu0 0.0
        %393 = vmatprep.subr.mxu0 0.0
        %394 = vmatpush2.msra.mxu0 0.0
        %395 = vmatprep.subr.mxu0 0.0
        %396 = vmatpush2.msra.mxu0 0.0
        %397 = vmatprep.subr.mxu0 0.0
        %398 = vmatpush2.msra.mxu0 0.0
        %399 = vmatprep.subr.mxu0 0.0
        %400 = vmatpush2.msra.mxu0 0.0
        %401 = vmatprep.subr.mxu0 0.0
        %402 = vmatpush2.msra.mxu0 0.0
        %403 = vmatprep.subr.mxu0 0.0
        %404 = vmatpush2.msra.mxu0 0.0
        %405 = vmatprep.subr.mxu0 0.0
        %406 = vmatpush2.msra.mxu0 0.0
        %407 = vmatprep.mubr.f32.mxu0 0.0
        %408 = vmatmul.mubr.f32.gmra.mxu0 %v296
        %v409 = vpop.f32.mrf.mxu0
        %v410 = vadd.f32 %v292, %v409
        %v411 = vpop.f32.mrf.mxu0
        %412 = vmatprep.mubr.f32.mxu0 0.0
        %413 = vmatmul.mubr.f32.gmra.mxu0 %v299
        %v414 = vpop.f32.mrf.mxu0
        %v415 = vadd.f32 %v292, %v414
        %v416 = vpop.f32.mrf.mxu0
        %417 = vmatprep.mubr.f32.mxu0 0.0
        %418 = vmatmul.mubr.f32.gmra.mxu0 %v302
        %v419 = vpop.f32.mrf.mxu0
        %v420 = vadd.f32 %v292, %v419
        %v421 = vpop.f32.mrf.mxu0
        %422 = vmatprep.mubr.f32.mxu0 0.0
        %423 = vmatmul.mubr.f32.gmra.mxu0 %v305
        %v424 = vpop.f32.mrf.mxu0
        %v425 = vadd.f32 %v292, %v424
        %v426 = vpop.f32.mrf.mxu0
        %427 = vmatprep.mubr.f32.mxu0 0.0
        %428 = vmatmul.mubr.f32.gmra.mxu0 %v308
        %v429 = vpop.f32.mrf.mxu0
        %v430 = vadd.f32 %v292, %v429
        %v431 = vpop.f32.mrf.mxu0
        %432 = vmatprep.mubr.f32.mxu0 0.0
        %433 = vmatmul.mubr.f32.gmra.mxu0 %v311
        %v434 = vpop.f32.mrf.mxu0
        %v435 = vadd.f32 %v292, %v434
        %v436 = vpop.f32.mrf.mxu0
        %437 = vmatprep.mubr.f32.mxu0 0.0
        %438 = vmatmul.mubr.f32.gmra.mxu0 %v314
        %v439 = vpop.f32.mrf.mxu0
        %v440 = vadd.f32 %v292, %v439
        %v441 = vpop.f32.mrf.mxu0
        %442 = vmatprep.mubr.f32.mxu0 0.0
        %443 = vmatmul.mubr.f32.gmra.mxu0 %v317
        %v444 = vpop.f32.mrf.mxu0
        %v445 = vadd.f32 %v292, %v444
        %v446 = vpop.f32.mrf.mxu0
        %447 = vmatprep.mubr.f32.mxu0 0.0
        %448 = vmatmul.mubr.f32.gmra.mxu0 %v320
        %v449 = vpop.f32.mrf.mxu0
        %v450 = vadd.f32 %v292, %v449
        %v451 = vpop.f32.mrf.mxu0
        %452 = vmatprep.mubr.f32.mxu0 0.0
        %453 = vmatmul.mubr.f32.gmra.mxu0 %v323
        %v454 = vpop.f32.mrf.mxu0
        %v455 = vadd.f32 %v292, %v454
        %v456 = vpop.f32.mrf.mxu0
        %457 = vmatprep.mubr.f32.mxu0 0.0
        %458 = vmatmul.mubr.f32.gmra.mxu0 %v326
        %v459 = vpop.f32.mrf.mxu0
        %v460 = vadd.f32 %v292, %v459
        %v461 = vpop.f32.mrf.mxu0
        %462 = vmatprep.mubr.f32.mxu0 0.0
        %463 = vmatmul.mubr.f32.gmra.mxu0 %v329
        %v464 = vpop.f32.mrf.mxu0
        %v465 = vadd.f32 %v292, %v464
        %v466 = vpop.f32.mrf.mxu0
        %467 = vmatprep.mubr.f32.mxu0 0.0
        %468 = vmatmul.mubr.f32.gmra.mxu0 %v332
        %v469 = vpop.f32.mrf.mxu0
        %v470 = vadd.f32 %v292, %v469
        %v471 = vpop.f32.mrf.mxu0
        %472 = vmatprep.mubr.f32.mxu0 0.0
        %473 = vmatmul.mubr.f32.gmra.mxu0 %v335
        %v474 = vpop.f32.mrf.mxu0
        %v475 = vadd.f32 %v292, %v474
        %v476 = vpop.f32.mrf.mxu0
        %477 = vmatprep.mubr.f32.mxu0 0.0
        %478 = vmatmul.mubr.f32.gmra.mxu0 %v338
        %v479 = vpop.f32.mrf.mxu0
        %v480 = vadd.f32 %v292, %v479
        %v481 = vpop.f32.mrf.mxu0
        %482 = vmatprep.mubr.f32.mxu0 0.0
        %483 = vmatmul.mubr.f32.gmra.mxu0 %v341
        %v484 = vpop.f32.mrf.mxu0
        %v485 = vadd.f32 %v292, %v484
        %v486 = vpop.f32.mrf.mxu0
        %487 = vdwg.mxu0
        %v488 = vmax.f32 %v410, 0.0
        %v489 = vmax.f32 %v415, 0.0
        %v490 = vmax.f32 %v420, 0.0
        %v491 = vmax.f32 %v425, 0.0
        %v492 = vmax.f32 %v430, 0.0
        %v493 = vmax.f32 %v435, 0.0
        %v494 = vmax.f32 %v440, 0.0
        %v495 = vmax.f32 %v445, 0.0
        %v496 = vmax.f32 %v450, 0.0
        %v497 = vmax.f32 %v455, 0.0
        %v498 = vmax.f32 %v460, 0.0
        %v499 = vmax.f32 %v465, 0.0
        %v500 = vmax.f32 %v470, 0.0
        %v501 = vmax.f32 %v475, 0.0
        %v502 = vmax.f32 %v480, 0.0
        %v503 = vmax.f32 %v485, 0.0
        %v504 = vld [vmem:[%s3] sm:$0x1]
        %s505 = sld [smem:[#allocation2]]
        %v506 = vstv %s505
        %vm507 = vcmask 130048
        %v509 = vsel %vm507, %v504, 0
        %v512 = vsel %vm507, %v488, 0
        %v515 = vsel %vm507, %v489, 0
        %v518 = vsel %vm507, %v490, 0
        %v521 = vsel %vm507, %v491, 0
        %v524 = vsel %vm507, %v492, 0
        %v527 = vsel %vm507, %v493, 0
        %v530 = vsel %vm507, %v494, 0
        %v533 = vsel %vm507, %v495, 0
        %v536 = vsel %vm507, %v496, 0
        %v539 = vsel %vm507, %v497, 0
        %v542 = vsel %vm507, %v498, 0
        %v545 = vsel %vm507, %v499, 0
        %v548 = vsel %vm507, %v500, 0
        %v551 = vsel %vm507, %v501, 0
        %v554 = vsel %vm507, %v502, 0
        %v557 = vsel %vm507, %v503, 0
        %559 = vmatprep.subr.mxu0 0.0
        %560 = vmatpush1.xpose.msra.mxu0 %v557
        %561 = vmatprep.subr.mxu0 0.0
        %562 = vmatpush1.xpose.msra.mxu0 %v554
        %563 = vmatprep.subr.mxu0 0.0
        %564 = vmatpush1.xpose.msra.mxu0 %v551
        %565 = vmatprep.subr.mxu0 0.0
        %566 = vmatpush1.xpose.msra.mxu0 %v548
        %567 = vmatprep.subr.mxu0 0.0
        %568 = vmatpush1.xpose.msra.mxu0 %v545
        %569 = vmatprep.subr.mxu0 0.0
        %570 = vmatpush1.xpose.msra.mxu0 %v542
        %571 = vmatprep.subr.mxu0 0.0
        %572 = vmatpush1.xpose.msra.mxu0 %v539
        %573 = vmatprep.subr.mxu0 0.0
        %574 = vmatpush1.xpose.msra.mxu0 %v536
        %575 = vmatprep.subr.mxu0 0.0
        %576 = vmatpush1.xpose.msra.mxu0 %v533
        %577 = vmatprep.subr.mxu0 0.0
        %578 = vmatpush1.xpose.msra.mxu0 %v530
        %579 = vmatprep.subr.mxu0 0.0
        %580 = vmatpush1.xpose.msra.mxu0 %v527
        %581 = vmatprep.subr.mxu0 0.0
        %582 = vmatpush1.xpose.msra.mxu0 %v524
        %583 = vmatprep.subr.mxu0 0.0
        %584 = vmatpush1.xpose.msra.mxu0 %v521
        %585 = vmatprep.subr.mxu0 0.0
        %586 = vmatpush1.xpose.msra.mxu0 %v518
        %587 = vmatprep.subr.mxu0 0.0
        %588 = vmatpush1.xpose.msra.mxu0 %v515
        %589 = vmatprep.subr.mxu0 0.0
        %590 = vmatpush1.xpose.msra.mxu0 %v512
        %591 = vmatprep.subr.mxu0 0.0
        %592 = vmatpush2.xpose.msra.mxu0 0.0
        %593 = vmatprep.subr.mxu0 0.0
        %594 = vmatpush2.xpose.msra.mxu0 0.0
        %595 = vmatprep.subr.mxu0 0.0
        %596 = vmatpush2.xpose.msra.mxu0 0.0
        %597 = vmatprep.subr.mxu0 0.0
        %598 = vmatpush2.xpose.msra.mxu0 0.0
        %599 = vmatprep.subr.mxu0 0.0
        %600 = vmatpush2.xpose.msra.mxu0 0.0
        %601 = vmatprep.subr.mxu0 0.0
        %602 = vmatpush2.xpose.msra.mxu0 0.0
        %603 = vmatprep.subr.mxu0 0.0
        %604 = vmatpush2.xpose.msra.mxu0 0.0
        %605 = vmatprep.subr.mxu0 0.0
        %606 = vmatpush2.xpose.msra.mxu0 0.0
        %607 = vmatprep.subr.mxu0 0.0
        %608 = vmatpush2.xpose.msra.mxu0 0.0
        %609 = vmatprep.subr.mxu0 0.0
        %610 = vmatpush2.xpose.msra.mxu0 0.0
        %611 = vmatprep.subr.mxu0 0.0
        %612 = vmatpush2.xpose.msra.mxu0 0.0
        %613 = vmatprep.subr.mxu0 0.0
        %614 = vmatpush2.xpose.msra.mxu0 0.0
        %615 = vmatprep.subr.mxu0 0.0
        %616 = vmatpush2.xpose.msra.mxu0 0.0
        %617 = vmatprep.subr.mxu0 0.0
        %618 = vmatpush2.xpose.msra.mxu0 0.0
        %619 = vmatprep.subr.mxu0 0.0
        %620 = vmatpush2.xpose.msra.mxu0 0.0
        %621 = vmatprep.subr.mxu0 0.0
        %622 = vmatpush2.xpose.msra.mxu0 0.0
        %623 = vmatprep.mubr.f32.mxu0 0.0
        %624 = vmatmul.mubr.f32.gmra.mxu0 %v509
        %v625 = vpop.f32.mrf.mxu0
        %v626 = vadd.f32 %v506, %v625
        %v627 = vpop.f32.mrf.mxu0
        %628 = vdwg.mxu0
        %v629 = vxor.u32 %v626, 2147483648
        %v630 = vmul.f32 %v629, 1.442695
        %v631 = vpow.pop %v630
        %v632 = vadd.f32 %v631, 1.0
        %v633 = vrcp.pop %v632
        %v634 = vmul.f32 1.0, %v633
        %v635 = vld [vmem:[%s266] sm:$0x1]
        %v636 = vlog2.pop %v634
        %v637 = vmul.f32 %v636, 0.6931472
        %v638 = vmax.f32 %v637, -100.0
        %v639 = vsub.f32 1.0, %v634
        %v640 = vlog2.pop %v639
        %v641 = vmul.f32 %v640, 0.6931472
        %v642 = vmax.f32 %v641, -100.0
        %v643 = vmul.f32 %v635, %v638
        %v644 = vsub.f32 1.0, %v635
        %v645 = vmul.f32 %v644, %v642
        %v646 = vadd.f32 %v643, %v645
        %v647 = vsub.f32 0.0, %v646
        %v649 = vlaneseq
        %v650 = vshrl.u32 %v649, 7
        %v651 = vsub.s32 0, %v650
        %v652 = vrot.slane %v647, %v651
        %vm654 = vcmask 1040384
        %v655 = vsel %vm654, %v634, %v652
        %656 = vst [vmem:[%s257] sm:$0x3] %v655
        %s657 = sand.u32 %s165, 1
        %s658 = scalar_lea.sflag [#allocation4], %s657
        %s659 = sand.u32 %s165, 1
        %s660 = smul.addr %s659, 2
        %s661 = scalar_lea.vmem [#allocation3], %s660
        // Predicated region
        $region45: #{tpu_custom_call.1} parent=43 // pred_check
          %p662 = pneg %p175
        $region46: #{tpu_custom_call.1} parent=43 // pred_check_branch
          %664 = sbr.rel (%p662) target = $region48
        $region47: #{tpu_custom_call.1} parent=43 // pred_region
          %s666 = ssub.s32 32, 32
          %667 = vsyncadd %s658, %s666
          %s668 = smul.addr %s21, 32
          %s669 = scalar_lea.hbm %s6, %s668
          %s671 = sshll.u32 %s661, 4
          %s672 = int_to_ptr.vmem [resolvable:$true] %s671
          %674 = dma.vmem_to_hbm [thread:$0]  %s672, 32, %s669, %s658
        $region48: #{tpu_custom_call.1} parent=43 // pred_fallthru
          _
      $region44: #{tpu_custom_call.1} parent=5 // pred_fallthru
        _
      %p675 = scmp.le.s32.totalorder 2, %s16
      // Predicated region
      $region49: #{tpu_custom_call.1} parent=5 // pred_check
        %p676 = pneg %p675
      $region50: #{tpu_custom_call.1} parent=5 // pred_check_branch
        %678 = sbr.rel (%p676) target = $region52
      $region51: #{tpu_custom_call.1} parent=5 // pred_region
        %s679 = ssub.s32 %s16, 2
        // Predicated region
        $region53: #{tpu_custom_call.1} parent=51 // pred_check
          %p680 = pneg %p181
        $region54: #{tpu_custom_call.1} parent=51 // pred_check_branch
          %682 = sbr.rel (%p680) target = $region56
        $region55: #{tpu_custom_call.1} parent=51 // pred_region
          %s683 = sand.u32 %s166, 1
          %s684 = scalar_lea.sflag [#allocation4], %s683
          %s685 = sand.u32 %s166, 1
          %s686 = smul.addr %s685, 2
          %s687 = scalar_lea.vmem [#allocation3], %s686
          %688 = dma.done %s684, 32
        $region56: #{tpu_custom_call.1} parent=51 // pred_fallthru
          _
      $region52: #{tpu_custom_call.1} parent=5 // pred_fallthru
        _
    $region6: #{tpu_custom_call.1} parent=1 // loop_footer
      %s20 = sadd.s32 1, %s16
    $region7: #{tpu_custom_call.1} parent=1 // loop_footer_branch
      %15 = sbr.rel target = $region3
    $region8: #{tpu_custom_call.1} parent=1 // loop_exit
      _
    %689 = vsyncpa [#allocation4], 1
    %s690 = scalar_lea.sflag [#allocation4], 1
    %691 = vsyncpa %s690, 1

</llo_original>
